<compile_context>
chip_gen: v6e
topology: v6e:2x2x1
jax: 0.10.0
libtpu: 0.0.40
codegen_flags: <defaults>
</compile_context>

<pallas_src>
import functools

import jax
import jax.numpy as jnp
from jax import lax
from jax.experimental import pallas as pl
from jax.experimental.pallas import tpu as pltpu


# ----------------------------- Pallas kernel ------------------------------- #
def _attn_map_kernel(x_ref, wq_ref, wk_ref, o_ref, *,
                     n_heads, head_dim, seq_len, scale, compute_dtype):
    """One grid step = one (batch, layer) pair, all heads fused.

    x_ref : (1, N, D)       tokens for one batch element (resident across layers)
    wq_ref: (1, D, H*dh)    head-fused query projection for one layer
    wk_ref: (1, D, H*dh)    head-fused key projection for one layer
    o_ref : (1, 1, N, H*N)  lane-packed maps; [i, h*N + j] = attn[head h, i, j]
    """
    # MXU operands in bf16 (f32 accumulation).  Softmax math stays f32.
    x = x_ref[0].astype(compute_dtype)            # (N, D)
    wq = wq_ref[0].astype(compute_dtype)          # (D, H*dh)
    wk = wk_ref[0].astype(compute_dtype)          # (D, H*dh)

    # Head-fused projections: one big matmul each instead of H tiny ones.
    q = jnp.dot(x, wq, preferred_element_type=jnp.float32)   # (N, H*dh) f32
    k = jnp.dot(x, wk, preferred_element_type=jnp.float32)   # (N, H*dh) f32

    for h in range(n_heads):                      # static unroll, H is compile-time
        qh = q[:, h * head_dim:(h + 1) * head_dim].astype(compute_dtype)
        kh = k[:, h * head_dim:(h + 1) * head_dim].astype(compute_dtype)
        # Contract on the last dim of both operands -> no explicit k.T.
        s = lax.dot_general(qh, kh, (((1,), (1,)), ((), ())),
                            preferred_element_type=jnp.float32) * scale   # (N, N)
        # numerically stable softmax in f32
        m = jnp.max(s, axis=-1, keepdims=True)
        p = jnp.exp(s - m)
        denom = jnp.sum(p, axis=-1, keepdims=True)
        # exact reciprocal keeps the numeric check tight; approx=True moves it
        # entirely to the otherwise-idle EUP slot at production scale.
        attn = p * pl.reciprocal(denom, approx=False)
        o_ref[0, 0, :, h * seq_len:(h + 1) * seq_len] = attn.astype(o_ref.dtype)


def attention_maps_pallas(tokens, wq, wk, *, compute_dtype=jnp.bfloat16):
    """tokens: (B, N, D) f32, wq/wk: (L, H, D, dh) f32 -> (L, B, H, N, N) f32."""
    B, N, D = tokens.shape
    L, H, _, dh = wq.shape
    scale = 1.0 / float(dh) ** 0.5

    # Fuse heads into the projection weights: (L, H, D, dh) -> (L, D, H*dh).
    wq_f = jnp.transpose(wq, (0, 2, 1, 3)).reshape(L, D, H * dh)
    wk_f = jnp.transpose(wk, (0, 2, 1, 3)).reshape(L, D, H * dh)

    kernel = functools.partial(
        _attn_map_kernel, n_heads=H, head_dim=dh, seq_len=N,
        scale=scale, compute_dtype=compute_dtype)

    # Explicit VMEM budget: double-buffered in/out blocks + headroom, clamped to
    # a range that is safe on every generation (v7x physical VMEM is 64 MiB).
    blk_bytes = 4 * (N * D + 2 * D * H * dh + N * H * N)
    vmem_limit = int(min(64 * 1024 * 1024,
                         max(16 * 1024 * 1024, 4 * blk_bytes + 2 * 1024 * 1024)))

    packed = pl.pallas_call(
        kernel,
        out_shape=jax.ShapeDtypeStruct((B, L, N, H * N), jnp.float32),
        grid_spec=pltpu.PrefetchScalarGridSpec(
            num_scalar_prefetch=0,
            # batch outermost: token tile fetched B times total (not B*L*H).
            grid=(B, L),
            in_specs=[
                pl.BlockSpec((1, N, D), lambda b, l: (b, 0, 0)),
                pl.BlockSpec((1, D, H * dh), lambda b, l: (l, 0, 0)),
                pl.BlockSpec((1, D, H * dh), lambda b, l: (l, 0, 0)),
            ],
            # (H, N, N) packed along lanes as (N, H*N): lane-densest output block.
            out_specs=pl.BlockSpec((1, 1, N, H * N), lambda b, l: (b, l, 0, 0)),
        ),
        compiler_params=pltpu.CompilerParams(
            dimension_semantics=("parallel", "parallel"),
            vmem_limit_bytes=vmem_limit,
        ),
    )(tokens, wq_f, wk_f)

    # Layout plumbing outside the kernel: (B, L, N, H, N) -> (L, B, H, N, N).
    return packed.reshape(B, L, N, H, N).transpose(1, 0, 3, 2, 4)


# ------------------------------ glue (JAX) --------------------------------- #
def patch_embed(x_nchw, w_embed, patch):
    """NCHW image -> (B, N, D) tokens via non-overlapping patches + linear proj."""
    B, C, Himg, Wimg = x_nchw.shape
    ph = Himg // patch
    pw = Wimg // patch
    x = x_nchw.reshape(B, C, ph, patch, pw, patch)
    x = jnp.transpose(x, (0, 2, 4, 1, 3, 5)).reshape(B, ph * pw, C * patch * patch)
    return x @ w_embed  # (B, N, D)


def attention_maps_forward(x_nchw, params, *, compute_dtype=jnp.bfloat16):
    """Mirrors AttentionMaps.forward: run model, concat per-layer maps on axis 0."""
    tokens = patch_embed(x_nchw, params["w_embed"], params["patch"])
    maps = attention_maps_pallas(tokens, params["wq"], params["wk"],
                                 compute_dtype=compute_dtype)   # (L, B, H, N, N)
    L, B, H, N, _ = maps.shape
    # torch.cat over per-layer (B,H,N,N) tensors along axis 0 -> (L*B, H, N, N)
    return maps.reshape(L * B, H, N, N)


# ---------------------------------------------------------------------------- #
if __name__ == "__main__":
    # small, TPU-friendly shapes
    B, C, Himg, Wimg = 2, 4, 16, 16        # NCHW image input
    patch = 4
    N = (Himg // patch) * (Wimg // patch)  # 16 tokens
    D = 32                                 # hidden
    H = 4                                  # heads
    dh = D // H                            # 8
    L = 2                                  # layers

    key = jax.random.PRNGKey(0)
    k_x, k_e, k_q, k_k = jax.random.split(key, 4)

    x = jax.random.normal(k_x, (B, C, Himg, Wimg), dtype=jnp.float32)
    params = {
        "patch": patch,
        "w_embed": 0.05 * jax.random.normal(k_e, (C * patch * patch, D), jnp.float32),
        "wq": 0.05 * jax.random.normal(k_q, (L, H, D, dh), jnp.float32),
        "wk": 0.05 * jax.random.normal(k_k, (L, H, D, dh), jnp.float32),
    }

    out = attention_maps_forward(x, params)
    out = jax.block_until_ready(out)

    # Reference in plain JAX, applying the same bf16 rounding to the MXU
    # operands that the kernel uses (accumulation is f32 in both).
    tokens = patch_embed(x, params["w_embed"], patch)
    tok_c = tokens.astype(jnp.bfloat16).astype(jnp.float32)
    wq_c = params["wq"].astype(jnp.bfloat16).astype(jnp.float32)
    wk_c = params["wk"].astype(jnp.bfloat16).astype(jnp.float32)
    q = jnp.einsum("bnd,lhde->lbhne", tok_c, wq_c)
    k = jnp.einsum("bnd,lhde->lbhne", tok_c, wk_c)
    q = q.astype(jnp.bfloat16).astype(jnp.float32)
    k = k.astype(jnp.bfloat16).astype(jnp.float32)
    s = jnp.einsum("lbhne,lbhme->lbhnm", q, k) / jnp.sqrt(jnp.float32(dh))
    ref = jax.nn.softmax(s, axis=-1).reshape(L * B, H, N, N)

    assert out.shape == (L * B, H, N, N), out.shape
    assert jnp.allclose(out, ref, atol=1e-3, rtol=1e-3), float(
        jnp.max(jnp.abs(out - ref)))

    print("KERNEL_OK")
</pallas_src>

<mosaic_0001>
module attributes {stable_mosaic.version = 11 : i64} {
  func.func @_attn_map_kernel(%arg0: i32, %arg1: i32, %arg2: memref<1x16x32xf32, #tpu.memory_space<vmem>>, %arg3: memref<1x32x32xf32, #tpu.memory_space<vmem>>, %arg4: memref<1x32x32xf32, #tpu.memory_space<vmem>>, %arg5: memref<1x1x16x64xf32, #tpu.memory_space<vmem>>) attributes {dimension_semantics = [#tpu.dimension_semantics<parallel>, #tpu.dimension_semantics<parallel>], iteration_bounds = array<i64: 2, 2>, scalar_prefetch = 0 : i64, scratch_operands = 0 : i64, tpu.core_type = #tpu.core_type<tc>, window_params = [{transform_indices = @transform_0, window_bounds = array<i64: 1, 16, 32>}, {transform_indices = @transform_1, window_bounds = array<i64: 1, 32, 32>}, {transform_indices = @transform_2, window_bounds = array<i64: 1, 32, 32>}, {transform_indices = @transform_3, window_bounds = array<i64: 1, 1, 16, 64>}]} {
    %c0 = arith.constant 0 : index
    %c0_0 = arith.constant 0 : index
    %c0_1 = arith.constant 0 : index
    %0 = vector.load %arg2[%c0, %c0_0, %c0_1] : memref<1x16x32xf32, #tpu.memory_space<vmem>>, vector<1x16x32xf32>
    %1 = vector.shape_cast %0 : vector<1x16x32xf32> to vector<16x32xf32>
    %2 = arith.truncf %1 : vector<16x32xf32> to vector<16x32xbf16>
    %c0_2 = arith.constant 0 : index
    %c0_3 = arith.constant 0 : index
    %c0_4 = arith.constant 0 : index
    %3 = vector.load %arg3[%c0_2, %c0_3, %c0_4] : memref<1x32x32xf32, #tpu.memory_space<vmem>>, vector<1x32x32xf32>
    %4 = vector.shape_cast %3 : vector<1x32x32xf32> to vector<32x32xf32>
    %5 = arith.truncf %4 : vector<32x32xf32> to vector<32x32xbf16>
    %c0_5 = arith.constant 0 : index
    %c0_6 = arith.constant 0 : index
    %c0_7 = arith.constant 0 : index
    %6 = vector.load %arg4[%c0_5, %c0_6, %c0_7] : memref<1x32x32xf32, #tpu.memory_space<vmem>>, vector<1x32x32xf32>
    %7 = vector.shape_cast %6 : vector<1x32x32xf32> to vector<32x32xf32>
    %8 = arith.truncf %7 : vector<32x32xf32> to vector<32x32xbf16>
    %cst = arith.constant dense<0.000000e+00> : vector<16x32xf32>
    %9 = tpu.matmul %2, %5, %cst {dimension_numbers = #tpu.dot_dimension_numbers<[1], [0], [0], [1], [0, 0, 1, 1], [], []>} : vector<16x32xbf16>, vector<32x32xbf16>, vector<16x32xf32> -> vector<16x32xf32>
    %cst_8 = arith.constant dense<0.000000e+00> : vector<16x32xf32>
    %10 = tpu.matmul %2, %8, %cst_8 {dimension_numbers = #tpu.dot_dimension_numbers<[1], [0], [0], [1], [0, 0, 1, 1], [], []>} : vector<16x32xbf16>, vector<32x32xbf16>, vector<16x32xf32> -> vector<16x32xf32>
    %11 = vector.extract_strided_slice %9 {offsets = [0, 0], sizes = [16, 8], strides = [1, 1]} : vector<16x32xf32> to vector<16x8xf32>
    %12 = arith.truncf %11 : vector<16x8xf32> to vector<16x8xbf16>
    %13 = vector.extract_strided_slice %10 {offsets = [0, 0], sizes = [16, 8], strides = [1, 1]} : vector<16x32xf32> to vector<16x8xf32>
    %14 = arith.truncf %13 : vector<16x8xf32> to vector<16x8xbf16>
    %cst_9 = arith.constant dense<0.000000e+00> : vector<16x16xf32>
    %15 = tpu.matmul %12, %14, %cst_9 {dimension_numbers = #tpu.dot_dimension_numbers<[1], [1], [0], [0], [0, 0, 1, 0], [], []>} : vector<16x8xbf16>, vector<16x8xbf16>, vector<16x16xf32> -> vector<16x16xf32>
    %cst_10 = arith.constant 0.353553385 : f32
    %16 = vector.broadcast %cst_10 : f32 to vector<16x16xf32>
    %17 = arith.mulf %15, %16 : vector<16x16xf32>
    %cst_11 = arith.constant dense<0xFF800000> : vector<16xf32>
    %18 = vector.multi_reduction <maximumf>, %17, %cst_11 [1] : vector<16x16xf32> to vector<16xf32>
    %19 = vector.shape_cast %18 : vector<16xf32> to vector<16x1xf32>
    %20 = vector.broadcast %19 : vector<16x1xf32> to vector<16x16xf32>
    %21 = arith.subf %17, %20 : vector<16x16xf32>
    %22 = math.exp %21 : vector<16x16xf32>
    %cst_12 = arith.constant dense<0.000000e+00> : vector<16xf32>
    %23 = vector.multi_reduction <add>, %22, %cst_12 [1] : vector<16x16xf32> to vector<16xf32>
    %24 = vector.shape_cast %23 : vector<16xf32> to vector<16x1xf32>
    %25 = tpu.reciprocal %24 : vector<16x1xf32> -> vector<16x1xf32>
    %26 = vector.broadcast %25 : vector<16x1xf32> to vector<16x16xf32>
    %27 = arith.mulf %22, %26 : vector<16x16xf32>
    %c0_13 = arith.constant 0 : index
    %c0_14 = arith.constant 0 : index
    %c0_15 = arith.constant 0 : index
    %c0_16 = arith.constant 0 : index
    %28 = vector.load %arg5[%c0_13, %c0_14, %c0_15, %c0_16] : memref<1x1x16x64xf32, #tpu.memory_space<vmem>>, vector<1x1x16x16xf32>
    %29 = vector.shape_cast %28 : vector<1x1x16x16xf32> to vector<16x16xf32>
    %30 = vector.shape_cast %27 : vector<16x16xf32> to vector<1x1x16x16xf32>
    tpu.vector_store %arg5[%c0_13, %c0_14, %c0_15, %c0_16], %30 {strides = array<i32>} : memref<1x1x16x64xf32, #tpu.memory_space<vmem>>, vector<1x1x16x16xf32>,
    %31 = vector.extract_strided_slice %9 {offsets = [0, 8], sizes = [16, 8], strides = [1, 1]} : vector<16x32xf32> to vector<16x8xf32>
    %32 = arith.truncf %31 : vector<16x8xf32> to vector<16x8xbf16>
    %33 = vector.extract_strided_slice %10 {offsets = [0, 8], sizes = [16, 8], strides = [1, 1]} : vector<16x32xf32> to vector<16x8xf32>
    %34 = arith.truncf %33 : vector<16x8xf32> to vector<16x8xbf16>
    %cst_17 = arith.constant dense<0.000000e+00> : vector<16x16xf32>
    %35 = tpu.matmul %32, %34, %cst_17 {dimension_numbers = #tpu.dot_dimension_numbers<[1], [1], [0], [0], [0, 0, 1, 0], [], []>} : vector<16x8xbf16>, vector<16x8xbf16>, vector<16x16xf32> -> vector<16x16xf32>
    %cst_18 = arith.constant 0.353553385 : f32
    %36 = vector.broadcast %cst_18 : f32 to vector<16x16xf32>
    %37 = arith.mulf %35, %36 : vector<16x16xf32>
    %cst_19 = arith.constant dense<0xFF800000> : vector<16xf32>
    %38 = vector.multi_reduction <maximumf>, %37, %cst_19 [1] : vector<16x16xf32> to vector<16xf32>
    %39 = vector.shape_cast %38 : vector<16xf32> to vector<16x1xf32>
    %40 = vector.broadcast %39 : vector<16x1xf32> to vector<16x16xf32>
    %41 = arith.subf %37, %40 : vector<16x16xf32>
    %42 = math.exp %41 : vector<16x16xf32>
    %cst_20 = arith.constant dense<0.000000e+00> : vector<16xf32>
    %43 = vector.multi_reduction <add>, %42, %cst_20 [1] : vector<16x16xf32> to vector<16xf32>
    %44 = vector.shape_cast %43 : vector<16xf32> to vector<16x1xf32>
    %45 = tpu.reciprocal %44 : vector<16x1xf32> -> vector<16x1xf32>
    %46 = vector.broadcast %45 : vector<16x1xf32> to vector<16x16xf32>
    %47 = arith.mulf %42, %46 : vector<16x16xf32>
    %c0_21 = arith.constant 0 : index
    %c0_22 = arith.constant 0 : index
    %c0_23 = arith.constant 0 : index
    %c16 = arith.constant 16 : index
    %48 = vector.load %arg5[%c0_21, %c0_22, %c0_23, %c16] : memref<1x1x16x64xf32, #tpu.memory_space<vmem>>, vector<1x1x16x16xf32>
    %49 = vector.shape_cast %48 : vector<1x1x16x16xf32> to vector<16x16xf32>
    %50 = vector.shape_cast %47 : vector<16x16xf32> to vector<1x1x16x16xf32>
    tpu.vector_store %arg5[%c0_21, %c0_22, %c0_23, %c16], %50 {strides = array<i32>} : memref<1x1x16x64xf32, #tpu.memory_space<vmem>>, vector<1x1x16x16xf32>,
    %51 = vector.extract_strided_slice %9 {offsets = [0, 16], sizes = [16, 8], strides = [1, 1]} : vector<16x32xf32> to vector<16x8xf32>
    %52 = arith.truncf %51 : vector<16x8xf32> to vector<16x8xbf16>
    %53 = vector.extract_strided_slice %10 {offsets = [0, 16], sizes = [16, 8], strides = [1, 1]} : vector<16x32xf32> to vector<16x8xf32>
    %54 = arith.truncf %53 : vector<16x8xf32> to vector<16x8xbf16>
    %cst_24 = arith.constant dense<0.000000e+00> : vector<16x16xf32>
    %55 = tpu.matmul %52, %54, %cst_24 {dimension_numbers = #tpu.dot_dimension_numbers<[1], [1], [0], [0], [0, 0, 1, 0], [], []>} : vector<16x8xbf16>, vector<16x8xbf16>, vector<16x16xf32> -> vector<16x16xf32>
    %cst_25 = arith.constant 0.353553385 : f32
    %56 = vector.broadcast %cst_25 : f32 to vector<16x16xf32>
    %57 = arith.mulf %55, %56 : vector<16x16xf32>
    %cst_26 = arith.constant dense<0xFF800000> : vector<16xf32>
    %58 = vector.multi_reduction <maximumf>, %57, %cst_26 [1] : vector<16x16xf32> to vector<16xf32>
    %59 = vector.shape_cast %58 : vector<16xf32> to vector<16x1xf32>
    %60 = vector.broadcast %59 : vector<16x1xf32> to vector<16x16xf32>
    %61 = arith.subf %57, %60 : vector<16x16xf32>
    %62 = math.exp %61 : vector<16x16xf32>
    %cst_27 = arith.constant dense<0.000000e+00> : vector<16xf32>
    %63 = vector.multi_reduction <add>, %62, %cst_27 [1] : vector<16x16xf32> to vector<16xf32>
    %64 = vector.shape_cast %63 : vector<16xf32> to vector<16x1xf32>
    %65 = tpu.reciprocal %64 : vector<16x1xf32> -> vector<16x1xf32>
    %66 = vector.broadcast %65 : vector<16x1xf32> to vector<16x16xf32>
    %67 = arith.mulf %62, %66 : vector<16x16xf32>
    %c0_28 = arith.constant 0 : index
    %c0_29 = arith.constant 0 : index
    %c0_30 = arith.constant 0 : index
    %c32 = arith.constant 32 : index
    %68 = vector.load %arg5[%c0_28, %c0_29, %c0_30, %c32] : memref<1x1x16x64xf32, #tpu.memory_space<vmem>>, vector<1x1x16x16xf32>
    %69 = vector.shape_cast %68 : vector<1x1x16x16xf32> to vector<16x16xf32>
    %70 = vector.shape_cast %67 : vector<16x16xf32> to vector<1x1x16x16xf32>
    tpu.vector_store %arg5[%c0_28, %c0_29, %c0_30, %c32], %70 {strides = array<i32>} : memref<1x1x16x64xf32, #tpu.memory_space<vmem>>, vector<1x1x16x16xf32>,
    %71 = vector.extract_strided_slice %9 {offsets = [0, 24], sizes = [16, 8], strides = [1, 1]} : vector<16x32xf32> to vector<16x8xf32>
    %72 = arith.truncf %71 : vector<16x8xf32> to vector<16x8xbf16>
    %73 = vector.extract_strided_slice %10 {offsets = [0, 24], sizes = [16, 8], strides = [1, 1]} : vector<16x32xf32> to vector<16x8xf32>
    %74 = arith.truncf %73 : vector<16x8xf32> to vector<16x8xbf16>
    %cst_31 = arith.constant dense<0.000000e+00> : vector<16x16xf32>
    %75 = tpu.matmul %72, %74, %cst_31 {dimension_numbers = #tpu.dot_dimension_numbers<[1], [1], [0], [0], [0, 0, 1, 0], [], []>} : vector<16x8xbf16>, vector<16x8xbf16>, vector<16x16xf32> -> vector<16x16xf32>
    %cst_32 = arith.constant 0.353553385 : f32
    %76 = vector.broadcast %cst_32 : f32 to vector<16x16xf32>
    %77 = arith.mulf %75, %76 : vector<16x16xf32>
    %cst_33 = arith.constant dense<0xFF800000> : vector<16xf32>
    %78 = vector.multi_reduction <maximumf>, %77, %cst_33 [1] : vector<16x16xf32> to vector<16xf32>
    %79 = vector.shape_cast %78 : vector<16xf32> to vector<16x1xf32>
    %80 = vector.broadcast %79 : vector<16x1xf32> to vector<16x16xf32>
    %81 = arith.subf %77, %80 : vector<16x16xf32>
    %82 = math.exp %81 : vector<16x16xf32>
    %cst_34 = arith.constant dense<0.000000e+00> : vector<16xf32>
    %83 = vector.multi_reduction <add>, %82, %cst_34 [1] : vector<16x16xf32> to vector<16xf32>
    %84 = vector.shape_cast %83 : vector<16xf32> to vector<16x1xf32>
    %85 = tpu.reciprocal %84 : vector<16x1xf32> -> vector<16x1xf32>
    %86 = vector.broadcast %85 : vector<16x1xf32> to vector<16x16xf32>
    %87 = arith.mulf %82, %86 : vector<16x16xf32>
    %c0_35 = arith.constant 0 : index
    %c0_36 = arith.constant 0 : index
    %c0_37 = arith.constant 0 : index
    %c48 = arith.constant 48 : index
    %88 = vector.load %arg5[%c0_35, %c0_36, %c0_37, %c48] : memref<1x1x16x64xf32, #tpu.memory_space<vmem>>, vector<1x1x16x16xf32>
    %89 = vector.shape_cast %88 : vector<1x1x16x16xf32> to vector<16x16xf32>
    %90 = vector.shape_cast %87 : vector<16x16xf32> to vector<1x1x16x16xf32>
    tpu.vector_store %arg5[%c0_35, %c0_36, %c0_37, %c48], %90 {strides = array<i32>} : memref<1x1x16x64xf32, #tpu.memory_space<vmem>>, vector<1x1x16x16xf32>,
    return
  }
  func.func @transform_0(%arg0: i32, %arg1: i32) -> (i32, i32, i32) {
    %c0_i32 = arith.constant 0 : i32
    %c0_i32_0 = arith.constant 0 : i32
    %c0_i32_1 = arith.constant 0 : i32
    return %arg0, %c0_i32, %c0_i32_0 : i32, i32, i32
  }
  func.func @transform_1(%arg0: i32, %arg1: i32) -> (i32, i32, i32) {
    %c0_i32 = arith.constant 0 : i32
    %c0_i32_0 = arith.constant 0 : i32
    %c0_i32_1 = arith.constant 0 : i32
    return %arg1, %c0_i32, %c0_i32_0 : i32, i32, i32
  }
  func.func @transform_2(%arg0: i32, %arg1: i32) -> (i32, i32, i32) {
    %c0_i32 = arith.constant 0 : i32
    %c0_i32_0 = arith.constant 0 : i32
    %c0_i32_1 = arith.constant 0 : i32
    return %arg1, %c0_i32, %c0_i32_0 : i32, i32, i32
  }
  func.func @transform_3(%arg0: i32, %arg1: i32) -> (i32, i32, i32, i32) {
    %c0_i32 = arith.constant 0 : i32
    %c0_i32_0 = arith.constant 0 : i32
    %c0_i32_1 = arith.constant 0 : i32
    return %arg0, %arg1, %c0_i32, %c0_i32_0 : i32, i32, i32, i32
  }
}

</mosaic_0001>

<llo_original>
// kernel: tpu_custom_call.1
$region0: #{tpu_custom_call.1}
  #allocation0 [shape = 'u32[]', space=smem, size = 0x4, offset = 0x4, fixed_abs, tag = 'smem constant byte address 0x4 - core index']
  #allocation1 [shape = 'u32[144,128]{1,0:T(1,128)}', space=vmem, size = 0x12000, scoped, tag = 'internal scratch']
  %s0 = inlined_call_operand.hbm [shape: f32[2,16,32], index: 0, kind: input, shape index: {}]
  %s1 = inlined_call_operand.hbm [shape: f32[2,32,32], index: 1, kind: input, shape index: {}]
  %s2 = inlined_call_operand.hbm [shape: f32[2,32,32], index: 2, kind: input, shape index: {}]
  %s3 = inlined_call_operand.hbm [shape: f32[2,2,16,64], index: 3, kind: output, shape index: {}]
  %s4 = sld [smem:[#allocation0]]
  $region57: #{tpu_custom_call.1} parent=0
    _
  %s6 = ssub.s32 1, %s4
  %s7 = scalar_select 0, %s6, %s4
  $region1: #{tpu_custom_call.1} parent=0
    #allocation2 [shape = 'u8[16384]{0}', space=vmem, size = 0x4000, scoped, tag = 'input window, operand 0']
    #allocation3 [shape = 's32[2]{0}', space=sflag, size = 0x8, scoped, tag = 'scoped memory for tpu_custom_call.1']
    #allocation4 [shape = 's32[2]{0}', space=sflag, size = 0x8, scoped, tag = 'scoped memory for tpu_custom_call.1']
    #allocation5 [shape = 'u8[32768]{0}', space=vmem, size = 0x8000, scoped, tag = 'input window, operand 1']
    #allocation6 [shape = 's32[2]{0}', space=sflag, size = 0x8, scoped, tag = 'scoped memory for tpu_custom_call.1']
    #allocation7 [shape = 'u8[32768]{0}', space=vmem, size = 0x8000, scoped, tag = 'input window, operand 2']
    #allocation8 [shape = 'u8[16384]{0}', space=vmem, size = 0x4000, scoped, tag = 'output window, operand 0']
    %8 = vsyncpa [#allocation3], 0
    %s9 = scalar_lea.sflag [#allocation3], 1
    %10 = vsyncpa %s9, 0
    %11 = vsyncpa [#allocation6], 0
    %s12 = scalar_lea.sflag [#allocation6], 1
    %13 = vsyncpa %s12, 0
    %14 = vsyncpa [#allocation4], 0
    %s15 = scalar_lea.sflag [#allocation4], 1
    %16 = vsyncpa %s15, 0
    loop: start=0, step=1, limit=6
    $region2: #{tpu_custom_call.1} parent=1 // loop_pre_header
      _
    $region3: #{tpu_custom_call.1} parent=1 // loop_header
      %s18 = sphi 0, %s22
      %p19 = scmp.ge.s32.totalorder %s18, 6
      %s25 = sphi 0, %s37
      %s26 = sphi 0, %s33
      %s27 = sphi 0, %s25
      %s28 = sphi 0, %s26
      %s29 = sphi 0, %s27
      %s30 = sphi 0, %s28
      %s40 = sphi 0, %s42
      %s43 = sphi 0, %s40
      %s44 = sphi 0, %s43
      %s60 = sphi 0, %s44
      %s66 = sphi 0, %s68
      %s69 = sphi 0, %s66
      %s70 = sphi 0, %s69
      %s86 = sphi 0, %s70
      %s92 = sphi 0, %s94
      %s95 = sphi 0, %s92
      %s96 = sphi 0, %s95
      %s112 = sphi 0, %s96
      %s120 = sphi 0, %s122
      %s123 = sphi 0, %s120
      %s124 = sphi 0, %s123
      %s140 = sphi 0, %s124
    $region4: #{tpu_custom_call.1} parent=1 // loop_header_branch
      %21 = sbr.rel (%p19) target = $region8
    $region5: #{tpu_custom_call.1} parent=1 // loop_body
      %s23 = ssub.s32 %s18, 1
      %s24 = ssub.s32 %s18, 2
      %s31 = sadd.s32 1, %s26
      %p32 = scmp.ge.s32.totalorder %s31, 2
      %s33 = scalar_select %p32, 0, %s31
      %s34 = sadd.s32 1, %s25
      %s35 = scalar_select %p32, %s34, %s25
      %p36 = scmp.ge.s32.totalorder %s35, 2
      %s37 = scalar_select %p36, 0, %s35
      %s38 = ssub.s32 %s25, %s37
      %p39 = scmp.eq.s32.totalorder %s38, 0
      %s41 = sadd.s32 %s40, 1
      %s42 = scalar_select %p39, %s40, %s41
      %p45 = pneg %p39
      %p46 = scmp.eq.s32.totalorder %s18, 3
      %p47 = por %p45, %p46
      %p48 = scmp.ne.s32.totalorder %s40, %s43
      %p49 = scmp.eq.s32.totalorder %s18, 0
      %p50 = por %p48, %p49
      %p51 = scmp.ne.s32.totalorder %s40, %s43
      %p52 = scmp.eq.s32.totalorder %s23, 3
      %p53 = por %p51, %p52
      %p54 = scmp.ne.s32.totalorder %s43, %s44
      %p55 = scmp.eq.s32.totalorder %s23, 0
      %p56 = por %p54, %p55
      %p57 = scmp.ne.s32.totalorder %s43, %s44
      %p58 = scmp.eq.s32.totalorder %s24, 3
      %p59 = por %p57, %p58
      %p61 = scmp.ne.s32.totalorder %s44, %s60
      %p62 = scmp.eq.s32.totalorder %s24, 0
      %p63 = por %p61, %p62
      %s64 = ssub.s32 %s26, %s33
      %p65 = scmp.eq.s32.totalorder %s64, 0
      %s67 = sadd.s32 %s66, 1
      %s68 = scalar_select %p65, %s66, %s67
      %p71 = pneg %p65
      %p72 = scmp.eq.s32.totalorder %s18, 3
      %p73 = por %p71, %p72
      %p74 = scmp.ne.s32.totalorder %s66, %s69
      %p75 = scmp.eq.s32.totalorder %s18, 0
      %p76 = por %p74, %p75
      %p77 = scmp.ne.s32.totalorder %s66, %s69
      %p78 = scmp.eq.s32.totalorder %s23, 3
      %p79 = por %p77, %p78
      %p80 = scmp.ne.s32.totalorder %s69, %s70
      %p81 = scmp.eq.s32.totalorder %s23, 0
      %p82 = por %p80, %p81
      %p83 = scmp.ne.s32.totalorder %s69, %s70
      %p84 = scmp.eq.s32.totalorder %s24, 3
      %p85 = por %p83, %p84
      %p87 = scmp.ne.s32.totalorder %s70, %s86
      %p88 = scmp.eq.s32.totalorder %s24, 0
      %p89 = por %p87, %p88
      %s90 = ssub.s32 %s26, %s33
      %p91 = scmp.eq.s32.totalorder %s90, 0
      %s93 = sadd.s32 %s92, 1
      %s94 = scalar_select %p91, %s92, %s93
      %p97 = pneg %p91
      %p98 = scmp.eq.s32.totalorder %s18, 3
      %p99 = por %p97, %p98
      %p100 = scmp.ne.s32.totalorder %s92, %s95
      %p101 = scmp.eq.s32.totalorder %s18, 0
      %p102 = por %p100, %p101
      %p103 = scmp.ne.s32.totalorder %s92, %s95
      %p104 = scmp.eq.s32.totalorder %s23, 3
      %p105 = por %p103, %p104
      %p106 = scmp.ne.s32.totalorder %s95, %s96
      %p107 = scmp.eq.s32.totalorder %s23, 0
      %p108 = por %p106, %p107
      %p109 = scmp.ne.s32.totalorder %s95, %s96
      %p110 = scmp.eq.s32.totalorder %s24, 3
      %p111 = por %p109, %p110
      %p113 = scmp.ne.s32.totalorder %s96, %s112
      %p114 = scmp.eq.s32.totalorder %s24, 0
      %p115 = por %p113, %p114
      %s116 = ssub.s32 %s25, %s37
      %s117 = ssub.s32 %s26, %s33
      %s118 = sor.u32 %s116, %s117
      %p119 = scmp.eq.s32.totalorder %s118, 0
      %s121 = sadd.s32 %s120, 1
      %s122 = scalar_select %p119, %s120, %s121
      %p125 = pneg %p119
      %p126 = scmp.eq.s32.totalorder %s18, 3
      %p127 = por %p125, %p126
      %p128 = scmp.ne.s32.totalorder %s120, %s123
      %p129 = scmp.eq.s32.totalorder %s18, 0
      %p130 = por %p128, %p129
      %p131 = scmp.ne.s32.totalorder %s120, %s123
      %p132 = scmp.eq.s32.totalorder %s23, 3
      %p133 = por %p131, %p132
      %p134 = scmp.ne.s32.totalorder %s123, %s124
      %p135 = scmp.eq.s32.totalorder %s23, 0
      %p136 = por %p134, %p135
      %p137 = scmp.ne.s32.totalorder %s123, %s124
      %p138 = scmp.eq.s32.totalorder %s24, 3
      %p139 = por %p137, %p138
      %p141 = scmp.ne.s32.totalorder %s124, %s140
      %p142 = scmp.eq.s32.totalorder %s24, 0
      %p143 = por %p141, %p142
      %p144 = scmp.le.s32.totalorder 1, %s18
      %p145 = scmp.lt.s32.totalorder %s18, 5
      %p146 = pnand %p144, %p145
      %p147 = pneg %p146
      // Predicated region
      $region9: #{tpu_custom_call.1} parent=5 // pred_check
        _
      $region10: #{tpu_custom_call.1} parent=5 // pred_check_branch
        %149 = sbr.rel (%p146) target = $region12
      $region11: #{tpu_custom_call.1} parent=5 // pred_region
        %s150 = ssub.s32 %s18, 1
      $region12: #{tpu_custom_call.1} parent=5 // pred_fallthru
        _
      %p151 = scmp.lt.s32.totalorder %s18, 4
      // Predicated region
      $region13: #{tpu_custom_call.1} parent=5 // pred_check
        %p152 = pneg %p151
      $region14: #{tpu_custom_call.1} parent=5 // pred_check_branch
        %154 = sbr.rel (%p152) target = $region16
      $region15: #{tpu_custom_call.1} parent=5 // pred_region
        // Predicated region
        $region17: #{tpu_custom_call.1} parent=15 // pred_check
          %p155 = pneg %p50
        $region18: #{tpu_custom_call.1} parent=15 // pred_check_branch
          %157 = sbr.rel (%p155) target = $region20
        $region19: #{tpu_custom_call.1} parent=15 // pred_region
          %s158 = sand.u32 %s40, 1
          %s159 = scalar_lea.sflag [#allocation3], %s158
          %s160 = sand.u32 %s40, 1
          %s161 = smul.addr %s160, 16
          %s162 = scalar_lea.vmem [#allocation2], %s161
          %s164 = ssub.s32 256, 256
          %165 = vsyncadd %s159, %s164
          %s166 = smul.addr %s25, 2
          %s167 = smul.addr %s166, 128
          %s168 = scalar_lea.hbm %s0, %s167
          %s169 = sshll.u32 %s162, 4
          %s170 = int_to_ptr.vmem [resolvable:$true] %s169
          %175 = dma.hbm_to_vmem [thread:$0]  %s168, 256, %s170, %s159, 128, 128, 8
        $region20: #{tpu_custom_call.1} parent=15 // pred_fallthru
          _
        // Predicated region
        $region21: #{tpu_custom_call.1} parent=15 // pred_check
          %p176 = pneg %p76
        $region22: #{tpu_custom_call.1} parent=15 // pred_check_branch
          %178 = sbr.rel (%p176) target = $region24
        $region23: #{tpu_custom_call.1} parent=15 // pred_region
          %s179 = sand.u32 %s18, 1
          %s180 = scalar_lea.sflag [#allocation6], %s179
          %s181 = sand.u32 %s66, 1
          %s182 = smul.addr %s181, 32
          %s183 = scalar_lea.vmem [#allocation5], %s182
          %s185 = ssub.s32 512, 512
          %186 = vsyncadd %s180, %s185
          %s187 = smul.addr %s26, 4
          %s188 = smul.addr %s187, 128
          %s189 = scalar_lea.hbm %s1, %s188
          %s190 = sshll.u32 %s183, 4
          %s191 = int_to_ptr.vmem [resolvable:$true] %s190
          %196 = dma.hbm_to_vmem [thread:$0]  %s189, 512, %s191, %s180, 128, 128, 8
        $region24: #{tpu_custom_call.1} parent=15 // pred_fallthru
          _
        // Predicated region
        $region25: #{tpu_custom_call.1} parent=15 // pred_check
          %p197 = pneg %p102
        $region26: #{tpu_custom_call.1} parent=15 // pred_check_branch
          %199 = sbr.rel (%p197) target = $region28
        $region27: #{tpu_custom_call.1} parent=15 // pred_region
          %s200 = sand.u32 %s18, 1
          %s201 = scalar_lea.sflag [#allocation6], %s200
          %s202 = sand.u32 %s92, 1
          %s203 = smul.addr %s202, 32
          %s204 = scalar_lea.vmem [#allocation7], %s203
          %s206 = ssub.s32 512, 512
          %207 = vsyncadd %s201, %s206
          %s208 = smul.addr %s26, 4
          %s209 = smul.addr %s208, 128
          %s210 = scalar_lea.hbm %s2, %s209
          %s211 = sshll.u32 %s204, 4
          %s212 = int_to_ptr.vmem [resolvable:$true] %s211
          %217 = dma.hbm_to_vmem [thread:$0]  %s210, 512, %s212, %s201, 128, 128, 8
        $region28: #{tpu_custom_call.1} parent=15 // pred_fallthru
          _
      $region16: #{tpu_custom_call.1} parent=5 // pred_fallthru
        _
      %p218 = scmp.le.s32.totalorder 1, %s18
      %p219 = scmp.lt.s32.totalorder %s18, 5
      %p220 = pnand %p218, %p219
      %p221 = pneg %p220
      // Predicated region
      $region29: #{tpu_custom_call.1} parent=5 // pred_check
        _
      $region30: #{tpu_custom_call.1} parent=5 // pred_check_branch
        %223 = sbr.rel (%p220) target = $region32
      $region31: #{tpu_custom_call.1} parent=5 // pred_region
        %s224 = ssub.s32 %s18, 1
        %s225 = sand.u32 %s43, 1
        %s226 = scalar_lea.sflag [#allocation3], %s225
        %s227 = sand.u32 %s43, 1
        %s228 = smul.addr %s227, 16
        %s229 = scalar_lea.vmem [#allocation2], %s228
        // Predicated region
        $region33: #{tpu_custom_call.1} parent=31 // pred_check
          %p230 = pneg %p56
        $region34: #{tpu_custom_call.1} parent=31 // pred_check_branch
          %232 = sbr.rel (%p230) target = $region36
        $region35: #{tpu_custom_call.1} parent=31 // pred_region
          %233 = dma.done %s226, 256
        $region36: #{tpu_custom_call.1} parent=31 // pred_fallthru
          _
        %s234 = sand.u32 %s23, 1
        %s235 = scalar_lea.sflag [#allocation6], %s234
        %s236 = sand.u32 %s69, 1
        %s237 = smul.addr %s236, 32
        %s238 = scalar_lea.vmem [#allocation5], %s237
        // Predicated region
        $region37: #{tpu_custom_call.1} parent=31 // pred_check
          %p239 = pneg %p82
        $region38: #{tpu_custom_call.1} parent=31 // pred_check_branch
          %241 = sbr.rel (%p239) target = $region40
        $region39: #{tpu_custom_call.1} parent=31 // pred_region
          %242 = dma.done %s235, 512
        $region40: #{tpu_custom_call.1} parent=31 // pred_fallthru
          _
        %s243 = sand.u32 %s23, 1
        %s244 = scalar_lea.sflag [#allocation6], %s243
        %s245 = sand.u32 %s95, 1
        %s246 = smul.addr %s245, 32
        %s247 = scalar_lea.vmem [#allocation7], %s246
        // Predicated region
        $region41: #{tpu_custom_call.1} parent=31 // pred_check
          %p248 = pneg %p108
        $region42: #{tpu_custom_call.1} parent=31 // pred_check_branch
          %250 = sbr.rel (%p248) target = $region44
        $region43: #{tpu_custom_call.1} parent=31 // pred_region
          %251 = dma.done %s244, 512
        $region44: #{tpu_custom_call.1} parent=31 // pred_fallthru
          _
        %s252 = sand.u32 %s43, 1
        %s253 = scalar_lea.sflag [#allocation3], %s252
        %s254 = sand.u32 %s43, 1
        %s255 = smul.addr %s254, 16
        %s256 = scalar_lea.vmem [#allocation2], %s255
        %p257 = pneg %p56
        %p258 = pneg %p53
        %s259 = sand.u32 %s23, 1
        %s260 = scalar_lea.sflag [#allocation6], %s259
        %s261 = sand.u32 %s69, 1
        %s262 = smul.addr %s261, 32
        %s263 = scalar_lea.vmem [#allocation5], %s262
        %p264 = pneg %p82
        %p265 = pneg %p79
        %s266 = sand.u32 %s23, 1
        %s267 = scalar_lea.sflag [#allocation6], %s266
        %s268 = sand.u32 %s95, 1
        %s269 = smul.addr %s268, 32
        %s270 = scalar_lea.vmem [#allocation7], %s269
        %p271 = pneg %p108
        %p272 = pneg %p105
        %p273 = pneg %p136
        %p274 = pneg %p133
        %s275 = sand.u32 %s123, 1
        %s276 = scalar_lea.sflag [#allocation4], %s275
        %s277 = sand.u32 %s123, 1
        %s278 = smul.addr %s277, 16
        %s279 = scalar_lea.vmem [#allocation8], %s278
        %v281 = vld [vmem:[%s229] sm:$0xff]
        %v282 = vld [vmem:[%s229 + $0x8] sm:$0xff]
        %v283 = vpack.c.bf16 %v282, %v281
        %v284 = vld [vmem:[%s238] sm:$0xff]
        %v285 = vld [vmem:[%s238 + $0x8] sm:$0xff]
        %v286 = vld [vmem:[%s238 + $0x10] sm:$0xff]
        %v287 = vld [vmem:[%s238 + $0x18] sm:$0xff]
        %v288 = vpack.c.bf16 %v285, %v284
        %v289 = vpack.c.bf16 %v287, %v286
        %v290 = vld [vmem:[%s247] sm:$0xff]
        %v291 = vld [vmem:[%s247 + $0x8] sm:$0xff]
        %v292 = vld [vmem:[%s247 + $0x10] sm:$0xff]
        %v293 = vld [vmem:[%s247 + $0x18] sm:$0xff]
        %v294 = vpack.c.bf16 %v291, %v290
        %v295 = vpack.c.bf16 %v293, %v292
        %vm296 = vcmask 261120
        %v298 = vsel %vm296, %v283, 0
        %300 = vmatprep.subr.bf16.mxu0 0
        %301 = vmatpush1.bf16.msra.mxu0 0
        %302 = vmatprep.subr.bf16.mxu0 0
        %303 = vmatpush1.bf16.msra.mxu0 0
        %304 = vmatprep.subr.bf16.mxu0 0
        %305 = vmatpush1.bf16.msra.mxu0 0
        %306 = vmatprep.subr.bf16.mxu0 0
        %307 = vmatpush1.bf16.msra.mxu0 0
        %308 = vmatprep.subr.bf16.mxu0 0
        %309 = vmatpush1.bf16.msra.mxu0 0
        %310 = vmatprep.subr.bf16.mxu0 0
        %311 = vmatpush1.bf16.msra.mxu0 0
        %312 = vmatprep.subr.bf16.mxu0 0
        %313 = vmatpush1.bf16.msra.mxu0 %v289
        %314 = vmatprep.subr.bf16.mxu0 0
        %315 = vmatpush1.bf16.msra.mxu0 %v288
        %316 = vmatprep.subr.bf16.mxu0 0
        %317 = vmatpush2.bf16.msra.mxu0 0
        %318 = vmatprep.subr.bf16.mxu0 0
        %319 = vmatpush2.bf16.msra.mxu0 0
        %320 = vmatprep.subr.bf16.mxu0 0
        %321 = vmatpush2.bf16.msra.mxu0 0
        %322 = vmatprep.subr.bf16.mxu0 0
        %323 = vmatpush2.bf16.msra.mxu0 0
        %324 = vmatprep.subr.bf16.mxu0 0
        %325 = vmatpush2.bf16.msra.mxu0 0
        %326 = vmatprep.subr.bf16.mxu0 0
        %327 = vmatpush2.bf16.msra.mxu0 0
        %328 = vmatprep.subr.bf16.mxu0 0
        %329 = vmatpush2.bf16.msra.mxu0 0
        %330 = vmatprep.subr.bf16.mxu0 0
        %331 = vmatpush2.bf16.msra.mxu0 0
        %332 = vmatprep.mubr.bf16.mxu0 0
        %333 = vmatmul.mubr.bf16.gmra.mxu0 %v298
        %v334 = vpop.f32.mrf.mxu0
        %v335 = vadd.f32 0.0, %v334
        %v336 = vpop.f32.mrf.mxu0
        %v337 = vpop.f32.mrf.mxu0
        %v338 = vadd.f32 0.0, %v337
        %v339 = vpop.f32.mrf.mxu0
        %340 = vdwg.mxu0
        %341 = vmatprep.subr.bf16.mxu0 0
        %342 = vmatpush1.bf16.msra.mxu0 0
        %343 = vmatprep.subr.bf16.mxu0 0
        %344 = vmatpush1.bf16.msra.mxu0 0
        %345 = vmatprep.subr.bf16.mxu0 0
        %346 = vmatpush1.bf16.msra.mxu0 0
        %347 = vmatprep.subr.bf16.mxu0 0
        %348 = vmatpush1.bf16.msra.mxu0 0
        %349 = vmatprep.subr.bf16.mxu0 0
        %350 = vmatpush1.bf16.msra.mxu0 0
        %351 = vmatprep.subr.bf16.mxu0 0
        %352 = vmatpush1.bf16.msra.mxu0 0
        %353 = vmatprep.subr.bf16.mxu0 0
        %354 = vmatpush1.bf16.msra.mxu0 %v295
        %355 = vmatprep.subr.bf16.mxu0 0
        %356 = vmatpush1.bf16.msra.mxu0 %v294
        %357 = vmatprep.subr.bf16.mxu0 0
        %358 = vmatpush2.bf16.msra.mxu0 0
        %359 = vmatprep.subr.bf16.mxu0 0
        %360 = vmatpush2.bf16.msra.mxu0 0
        %361 = vmatprep.subr.bf16.mxu0 0
        %362 = vmatpush2.bf16.msra.mxu0 0
        %363 = vmatprep.subr.bf16.mxu0 0
        %364 = vmatpush2.bf16.msra.mxu0 0
        %365 = vmatprep.subr.bf16.mxu0 0
        %366 = vmatpush2.bf16.msra.mxu0 0
        %367 = vmatprep.subr.bf16.mxu0 0
        %368 = vmatpush2.bf16.msra.mxu0 0
        %369 = vmatprep.subr.bf16.mxu0 0
        %370 = vmatpush2.bf16.msra.mxu0 0
        %371 = vmatprep.subr.bf16.mxu0 0
        %372 = vmatpush2.bf16.msra.mxu0 0
        %373 = vmatprep.mubr.bf16.mxu0 0
        %374 = vmatmul.mubr.bf16.gmra.mxu0 %v298
        %v375 = vpop.f32.mrf.mxu0
        %v376 = vadd.f32 0.0, %v375
        %v377 = vpop.f32.mrf.mxu0
        %v378 = vpop.f32.mrf.mxu0
        %v379 = vadd.f32 0.0, %v378
        %v380 = vpop.f32.mrf.mxu0
        %381 = vdwg.mxu0
        %v382 = vpack.c.bf16 %v338, %v335
        %v383 = vpack.c.bf16 %v379, %v376
        %vm384 = vcmask 64512
        %v386 = vsel %vm384, %v382, 0
        %v389 = vsel %vm384, %v383, 0
        %391 = vmatprep.subr.bf16.mxu0 0
        %392 = vmatpush1.bf16.xpose.msra.mxu0 0
        %393 = vmatprep.subr.bf16.mxu0 0
        %394 = vmatpush1.bf16.xpose.msra.mxu0 0
        %395 = vmatprep.subr.bf16.mxu0 0
        %396 = vmatpush1.bf16.xpose.msra.mxu0 0
        %397 = vmatprep.subr.bf16.mxu0 0
        %398 = vmatpush1.bf16.xpose.msra.mxu0 0
        %399 = vmatprep.subr.bf16.mxu0 0
        %400 = vmatpush1.bf16.xpose.msra.mxu0 0
        %401 = vmatprep.subr.bf16.mxu0 0
        %402 = vmatpush1.bf16.xpose.msra.mxu0 0
        %403 = vmatprep.subr.bf16.mxu0 0
        %404 = vmatpush1.bf16.xpose.msra.mxu0 0
        %405 = vmatprep.subr.bf16.mxu0 0
        %406 = vmatpush1.bf16.xpose.msra.mxu0 %v389
        %407 = vmatprep.subr.bf16.mxu0 0
        %408 = vmatpush2.bf16.xpose.msra.mxu0 0
        %409 = vmatprep.subr.bf16.mxu0 0
        %410 = vmatpush2.bf16.xpose.msra.mxu0 0
        %411 = vmatprep.subr.bf16.mxu0 0
        %412 = vmatpush2.bf16.xpose.msra.mxu0 0
        %413 = vmatprep.subr.bf16.mxu0 0
        %414 = vmatpush2.bf16.xpose.msra.mxu0 0
        %415 = vmatprep.subr.bf16.mxu0 0
        %416 = vmatpush2.bf16.xpose.msra.mxu0 0
        %417 = vmatprep.subr.bf16.mxu0 0
        %418 = vmatpush2.bf16.xpose.msra.mxu0 0
        %419 = vmatprep.subr.bf16.mxu0 0
        %420 = vmatpush2.bf16.xpose.msra.mxu0 0
        %421 = vmatprep.subr.bf16.mxu0 0
        %422 = vmatpush2.bf16.xpose.msra.mxu0 0
        %423 = vmatprep.mubr.bf16.mxu0 0
        %424 = vmatmul.mubr.bf16.gmra.mxu0 %v386
        %v425 = vpop.f32.mrf.mxu0
        %v426 = vadd.f32 0.0, %v425
        %v427 = vpop.f32.mrf.mxu0
        %v428 = vpop.f32.mrf.mxu0
        %v429 = vadd.f32 0.0, %v428
        %v430 = vpop.f32.mrf.mxu0
        %431 = vdwg.mxu0
        %v432 = vmul.f32 %v426, 0.35355338
        %v433 = vmul.f32 %v429, 0.35355338
        %vm434 = vcmask 130048
        %v435 = vsel %vm434, %v432, -inf
        %436 = vmax.xlane.f32.xlu0 %v435
        %v437 = vpop.xlane.xlu0 %436
        %v438 = vsel %vm434, %v433, -inf
        %439 = vmax.xlane.f32.xlu0 %v438
        %v440 = vpop.xlane.xlu0 %439
        %v441 = vsub.f32 %v432, %v437
        %v442 = vsub.f32 %v433, %v440
        %v443 = vmul.f32 %v441, 1.442695
        %v444 = vpow.pop %v443
        %v445 = vmul.f32 %v442, 1.442695
        %v446 = vpow.pop %v445
        %v447 = vsel %vm434, %v444, 0.0
        %448 = vadd.xlane.f32.xlu0 %v447
        %v449 = vpop.xlane.xlu0 %448
        %v450 = vsel %vm434, %v446, 0.0
        %451 = vadd.xlane.f32.xlu0 %v450
        %v452 = vpop.xlane.xlu0 %451
        %v453 = vrcp.pop %v449
        %v454 = vrcp.pop %v452
        %v455 = vmul.f32 %v444, %v453
        %v456 = vmul.f32 %v446, %v454
        %457 = vst.msk [vmem:[%s279] sm:$0xff] %vm434, %v455
        %458 = vst.msk [vmem:[%s279 + $0x8] sm:$0xff] %vm434, %v456
        %460 = vrot.lane.b32.xlu0 %v382, 120
        %v461 = vpop.permute.xlu0 %460
        %463 = vrot.lane.b32.xlu0 %v383, 120
        %v464 = vpop.permute.xlu0 %463
        %v466 = vsel %vm384, %v461, 0
        %v469 = vsel %vm384, %v464, 0
        %471 = vmatprep.subr.bf16.mxu0 0
        %472 = vmatpush1.bf16.xpose.msra.mxu0 0
        %473 = vmatprep.subr.bf16.mxu0 0
        %474 = vmatpush1.bf16.xpose.msra.mxu0 0
        %475 = vmatprep.subr.bf16.mxu0 0
        %476 = vmatpush1.bf16.xpose.msra.mxu0 0
        %477 = vmatprep.subr.bf16.mxu0 0
        %478 = vmatpush1.bf16.xpose.msra.mxu0 0
        %479 = vmatprep.subr.bf16.mxu0 0
        %480 = vmatpush1.bf16.xpose.msra.mxu0 0
        %481 = vmatprep.subr.bf16.mxu0 0
        %482 = vmatpush1.bf16.xpose.msra.mxu0 0
        %483 = vmatprep.subr.bf16.mxu0 0
        %484 = vmatpush1.bf16.xpose.msra.mxu0 0
        %485 = vmatprep.subr.bf16.mxu0 0
        %486 = vmatpush1.bf16.xpose.msra.mxu0 %v469
        %487 = vmatprep.subr.bf16.mxu0 0
        %488 = vmatpush2.bf16.xpose.msra.mxu0 0
        %489 = vmatprep.subr.bf16.mxu0 0
        %490 = vmatpush2.bf16.xpose.msra.mxu0 0
        %491 = vmatprep.subr.bf16.mxu0 0
        %492 = vmatpush2.bf16.xpose.msra.mxu0 0
        %493 = vmatprep.subr.bf16.mxu0 0
        %494 = vmatpush2.bf16.xpose.msra.mxu0 0
        %495 = vmatprep.subr.bf16.mxu0 0
        %496 = vmatpush2.bf16.xpose.msra.mxu0 0
        %497 = vmatprep.subr.bf16.mxu0 0
        %498 = vmatpush2.bf16.xpose.msra.mxu0 0
        %499 = vmatprep.subr.bf16.mxu0 0
        %500 = vmatpush2.bf16.xpose.msra.mxu0 0
        %501 = vmatprep.subr.bf16.mxu0 0
        %502 = vmatpush2.bf16.xpose.msra.mxu0 0
        %503 = vmatprep.mubr.bf16.mxu0 0
        %504 = vmatmul.mubr.bf16.gmra.mxu0 %v466
        %v505 = vpop.f32.mrf.mxu0
        %v506 = vadd.f32 0.0, %v505
        %v507 = vpop.f32.mrf.mxu0
        %v508 = vpop.f32.mrf.mxu0
        %v509 = vadd.f32 0.0, %v508
        %v510 = vpop.f32.mrf.mxu0
        %511 = vdwg.mxu0
        %v512 = vmul.f32 %v506, 0.35355338
        %v513 = vmul.f32 %v509, 0.35355338
        %v514 = vsel %vm434, %v512, -inf
        %515 = vmax.xlane.f32.xlu0 %v514
        %v516 = vpop.xlane.xlu0 %515
        %v517 = vsel %vm434, %v513, -inf
        %518 = vmax.xlane.f32.xlu0 %v517
        %v519 = vpop.xlane.xlu0 %518
        %v520 = vsub.f32 %v512, %v516
        %v521 = vsub.f32 %v513, %v519
        %v522 = vmul.f32 %v520, 1.442695
        %v523 = vpow.pop %v522
        %v524 = vmul.f32 %v521, 1.442695
        %v525 = vpow.pop %v524
        %v526 = vsel %vm434, %v523, 0.0
        %527 = vadd.xlane.f32.xlu0 %v526
        %v528 = vpop.xlane.xlu0 %527
        %v529 = vsel %vm434, %v525, 0.0
        %530 = vadd.xlane.f32.xlu0 %v529
        %v531 = vpop.xlane.xlu0 %530
        %v532 = vrcp.pop %v528
        %v533 = vrcp.pop %v531
        %v534 = vmul.f32 %v523, %v532
        %v535 = vmul.f32 %v525, %v533
        %538 = vrot.lane.b32.xlu0 %v534, 16
        %v539 = vpop.permute.xlu0 %538
        %540 = vrot.lane.b32.xlu0 %v535, 16
        %v541 = vpop.permute.xlu0 %540
        %vm544 = vcmask 261248
        %545 = vst.msk [vmem:[%s279] sm:$0xff] %vm544, %v539
        %546 = vst.msk [vmem:[%s279 + $0x8] sm:$0xff] %vm544, %v541
        %547 = vrot.lane.b32.xlu0 %v382, 112
        %v548 = vpop.permute.xlu0 %547
        %549 = vrot.lane.b32.xlu0 %v383, 112
        %v550 = vpop.permute.xlu0 %549
        %v552 = vsel %vm384, %v548, 0
        %v555 = vsel %vm384, %v550, 0
        %557 = vmatprep.subr.bf16.mxu0 0
        %558 = vmatpush1.bf16.xpose.msra.mxu0 0
        %559 = vmatprep.subr.bf16.mxu0 0
        %560 = vmatpush1.bf16.xpose.msra.mxu0 0
        %561 = vmatprep.subr.bf16.mxu0 0
        %562 = vmatpush1.bf16.xpose.msra.mxu0 0
        %563 = vmatprep.subr.bf16.mxu0 0
        %564 = vmatpush1.bf16.xpose.msra.mxu0 0
        %565 = vmatprep.subr.bf16.mxu0 0
        %566 = vmatpush1.bf16.xpose.msra.mxu0 0
        %567 = vmatprep.subr.bf16.mxu0 0
        %568 = vmatpush1.bf16.xpose.msra.mxu0 0
        %569 = vmatprep.subr.bf16.mxu0 0
        %570 = vmatpush1.bf16.xpose.msra.mxu0 0
        %571 = vmatprep.subr.bf16.mxu0 0
        %572 = vmatpush1.bf16.xpose.msra.mxu0 %v555
        %573 = vmatprep.subr.bf16.mxu0 0
        %574 = vmatpush2.bf16.xpose.msra.mxu0 0
        %575 = vmatprep.subr.bf16.mxu0 0
        %576 = vmatpush2.bf16.xpose.msra.mxu0 0
        %577 = vmatprep.subr.bf16.mxu0 0
        %578 = vmatpush2.bf16.xpose.msra.mxu0 0
        %579 = vmatprep.subr.bf16.mxu0 0
        %580 = vmatpush2.bf16.xpose.msra.mxu0 0
        %581 = vmatprep.subr.bf16.mxu0 0
        %582 = vmatpush2.bf16.xpose.msra.mxu0 0
        %583 = vmatprep.subr.bf16.mxu0 0
        %584 = vmatpush2.bf16.xpose.msra.mxu0 0
        %585 = vmatprep.subr.bf16.mxu0 0
        %586 = vmatpush2.bf16.xpose.msra.mxu0 0
        %587 = vmatprep.subr.bf16.mxu0 0
        %588 = vmatpush2.bf16.xpose.msra.mxu0 0
        %589 = vmatprep.mubr.bf16.mxu0 0
        %590 = vmatmul.mubr.bf16.gmra.mxu0 %v552
        %v591 = vpop.f32.mrf.mxu0
        %v592 = vadd.f32 0.0, %v591
        %v593 = vpop.f32.mrf.mxu0
        %v594 = vpop.f32.mrf.mxu0
        %v595 = vadd.f32 0.0, %v594
        %v596 = vpop.f32.mrf.mxu0
        %597 = vdwg.mxu0
        %v598 = vmul.f32 %v592, 0.35355338
        %v599 = vmul.f32 %v595, 0.35355338
        %v600 = vsel %vm434, %v598, -inf
        %601 = vmax.xlane.f32.xlu0 %v600
        %v602 = vpop.xlane.xlu0 %601
        %v603 = vsel %vm434, %v599, -inf
        %604 = vmax.xlane.f32.xlu0 %v603
        %v605 = vpop.xlane.xlu0 %604
        %v606 = vsub.f32 %v598, %v602
        %v607 = vsub.f32 %v599, %v605
        %v608 = vmul.f32 %v606, 1.442695
        %v609 = vpow.pop %v608
        %v610 = vmul.f32 %v607, 1.442695
        %v611 = vpow.pop %v610
        %v612 = vsel %vm434, %v609, 0.0
        %613 = vadd.xlane.f32.xlu0 %v612
        %v614 = vpop.xlane.xlu0 %613
        %v615 = vsel %vm434, %v611, 0.0
        %616 = vadd.xlane.f32.xlu0 %v615
        %v617 = vpop.xlane.xlu0 %616
        %v618 = vrcp.pop %v614
        %v619 = vrcp.pop %v617
        %v620 = vmul.f32 %v609, %v618
        %v621 = vmul.f32 %v611, %v619
        %624 = vrot.lane.b32.xlu0 %v620, 32
        %v625 = vpop.permute.xlu0 %624
        %626 = vrot.lane.b32.xlu0 %v621, 32
        %v627 = vpop.permute.xlu0 %626
        %vm630 = vcmask 392448
        %631 = vst.msk [vmem:[%s279] sm:$0xff] %vm630, %v625
        %632 = vst.msk [vmem:[%s279 + $0x8] sm:$0xff] %vm630, %v627
        %633 = vrot.lane.b32.xlu0 %v382, 104
        %v634 = vpop.permute.xlu0 %633
        %635 = vrot.lane.b32.xlu0 %v383, 104
        %v636 = vpop.permute.xlu0 %635
        %v638 = vsel %vm384, %v634, 0
        %v641 = vsel %vm384, %v636, 0
        %643 = vmatprep.subr.bf16.mxu0 0
        %644 = vmatpush1.bf16.xpose.msra.mxu0 0
        %645 = vmatprep.subr.bf16.mxu0 0
        %646 = vmatpush1.bf16.xpose.msra.mxu0 0
        %647 = vmatprep.subr.bf16.mxu0 0
        %648 = vmatpush1.bf16.xpose.msra.mxu0 0
        %649 = vmatprep.subr.bf16.mxu0 0
        %650 = vmatpush1.bf16.xpose.msra.mxu0 0
        %651 = vmatprep.subr.bf16.mxu0 0
        %652 = vmatpush1.bf16.xpose.msra.mxu0 0
        %653 = vmatprep.subr.bf16.mxu0 0
        %654 = vmatpush1.bf16.xpose.msra.mxu0 0
        %655 = vmatprep.subr.bf16.mxu0 0
        %656 = vmatpush1.bf16.xpose.msra.mxu0 0
        %657 = vmatprep.subr.bf16.mxu0 0
        %658 = vmatpush1.bf16.xpose.msra.mxu0 %v641
        %659 = vmatprep.subr.bf16.mxu0 0
        %660 = vmatpush2.bf16.xpose.msra.mxu0 0
        %661 = vmatprep.subr.bf16.mxu0 0
        %662 = vmatpush2.bf16.xpose.msra.mxu0 0
        %663 = vmatprep.subr.bf16.mxu0 0
        %664 = vmatpush2.bf16.xpose.msra.mxu0 0
        %665 = vmatprep.subr.bf16.mxu0 0
        %666 = vmatpush2.bf16.xpose.msra.mxu0 0
        %667 = vmatprep.subr.bf16.mxu0 0
        %668 = vmatpush2.bf16.xpose.msra.mxu0 0
        %669 = vmatprep.subr.bf16.mxu0 0
        %670 = vmatpush2.bf16.xpose.msra.mxu0 0
        %671 = vmatprep.subr.bf16.mxu0 0
        %672 = vmatpush2.bf16.xpose.msra.mxu0 0
        %673 = vmatprep.subr.bf16.mxu0 0
        %674 = vmatpush2.bf16.xpose.msra.mxu0 0
        %675 = vmatprep.mubr.bf16.mxu0 0
        %676 = vmatmul.mubr.bf16.gmra.mxu0 %v638
        %v677 = vpop.f32.mrf.mxu0
        %v678 = vadd.f32 0.0, %v677
        %v679 = vpop.f32.mrf.mxu0
        %v680 = vpop.f32.mrf.mxu0
        %v681 = vadd.f32 0.0, %v680
        %v682 = vpop.f32.mrf.mxu0
        %683 = vdwg.mxu0
        %v684 = vmul.f32 %v678, 0.35355338
        %v685 = vmul.f32 %v681, 0.35355338
        %v686 = vsel %vm434, %v684, -inf
        %687 = vmax.xlane.f32.xlu0 %v686
        %v688 = vpop.xlane.xlu0 %687
        %v689 = vsel %vm434, %v685, -inf
        %690 = vmax.xlane.f32.xlu0 %v689
        %v691 = vpop.xlane.xlu0 %690
        %v692 = vsub.f32 %v684, %v688
        %v693 = vsub.f32 %v685, %v691
        %v694 = vmul.f32 %v692, 1.442695
        %v695 = vpow.pop %v694
        %v696 = vmul.f32 %v693, 1.442695
        %v697 = vpow.pop %v696
        %v698 = vsel %vm434, %v695, 0.0
        %699 = vadd.xlane.f32.xlu0 %v698
        %v700 = vpop.xlane.xlu0 %699
        %v701 = vsel %vm434, %v697, 0.0
        %702 = vadd.xlane.f32.xlu0 %v701
        %v703 = vpop.xlane.xlu0 %702
        %v704 = vrcp.pop %v700
        %v705 = vrcp.pop %v703
        %v706 = vmul.f32 %v695, %v704
        %v707 = vmul.f32 %v697, %v705
        %710 = vrot.lane.b32.xlu0 %v706, 48
        %v711 = vpop.permute.xlu0 %710
        %712 = vrot.lane.b32.xlu0 %v707, 48
        %v713 = vpop.permute.xlu0 %712
        %vm716 = vcmask 523648
        %717 = vst.msk [vmem:[%s279] sm:$0xff] %vm716, %v711
        %718 = vst.msk [vmem:[%s279 + $0x8] sm:$0xff] %vm716, %v713
        %s719 = sand.u32 %s123, 1
        %s720 = scalar_lea.sflag [#allocation4], %s719
        %s721 = sand.u32 %s123, 1
        %s722 = smul.addr %s721, 16
        %s723 = scalar_lea.vmem [#allocation8], %s722
        // Predicated region
        $region45: #{tpu_custom_call.1} parent=31 // pred_check
          %p724 = pneg %p133
        $region46: #{tpu_custom_call.1} parent=31 // pred_check_branch
          %726 = sbr.rel (%p724) target = $region48
        $region47: #{tpu_custom_call.1} parent=31 // pred_region
          %s728 = ssub.s32 256, 256
          %729 = vsyncadd %s720, %s728
          %s730 = smul.addr %s28, 2
          %s731 = smul.addr %s27, 4
          %s732 = sadd.s32 %s730, %s731
          %s733 = smul.addr %s732, 128
          %s734 = scalar_lea.hbm %s3, %s733
          %s735 = sshll.u32 %s723, 4
          %s736 = int_to_ptr.vmem [resolvable:$true] %s735
          %741 = dma.vmem_to_hbm [thread:$0]  %s736, 256, %s734, %s720, 128, 128, 8
        $region48: #{tpu_custom_call.1} parent=31 // pred_fallthru
          _
      $region32: #{tpu_custom_call.1} parent=5 // pred_fallthru
        _
      %p742 = scmp.le.s32.totalorder 2, %s18
      // Predicated region
      $region49: #{tpu_custom_call.1} parent=5 // pred_check
        %p743 = pneg %p742
      $region50: #{tpu_custom_call.1} parent=5 // pred_check_branch
        %745 = sbr.rel (%p743) target = $region52
      $region51: #{tpu_custom_call.1} parent=5 // pred_region
        %s746 = ssub.s32 %s18, 2
        // Predicated region
        $region53: #{tpu_custom_call.1} parent=51 // pred_check
          %p747 = pneg %p139
        $region54: #{tpu_custom_call.1} parent=51 // pred_check_branch
          %749 = sbr.rel (%p747) target = $region56
        $region55: #{tpu_custom_call.1} parent=51 // pred_region
          %s750 = sand.u32 %s124, 1
          %s751 = scalar_lea.sflag [#allocation4], %s750
          %s752 = sand.u32 %s124, 1
          %s753 = smul.addr %s752, 16
          %s754 = scalar_lea.vmem [#allocation8], %s753
          %755 = dma.done %s751, 256
        $region56: #{tpu_custom_call.1} parent=51 // pred_fallthru
          _
      $region52: #{tpu_custom_call.1} parent=5 // pred_fallthru
        _
    $region6: #{tpu_custom_call.1} parent=1 // loop_footer
      %s22 = sadd.s32 1, %s18
    $region7: #{tpu_custom_call.1} parent=1 // loop_footer_branch
      %17 = sbr.rel target = $region3
    $region8: #{tpu_custom_call.1} parent=1 // loop_exit
      _
    %756 = vsyncpa [#allocation3], 1
    %s757 = scalar_lea.sflag [#allocation3], 1
    %758 = vsyncpa %s757, 1
    %759 = vsyncpa [#allocation6], 1
    %s760 = scalar_lea.sflag [#allocation6], 1
    %761 = vsyncpa %s760, 1
    %762 = vsyncpa [#allocation4], 1
    %s763 = scalar_lea.sflag [#allocation4], 1
    %764 = vsyncpa %s763, 1

</llo_original>
